<compile_context>
chip_gen: v6e
topology: v6e:2x2x1
jax: 0.10.0
libtpu: 0.0.40
codegen_flags: <defaults>
</compile_context>

<pallas_src>
import functools

import jax
import jax.numpy as jnp
from jax.experimental import pallas as pl
from jax.experimental.pallas import tpu as pltpu

LANE = 128
CHUNK_ROWS = 64        # (64, 128) f32 chunk = 8 vregs; temporaries stay vreg-resident
MAX_BLOCK_ROWS = 8192  # 4 MiB per f32 input per grid step (~18 MiB double buffered)


def _round_up(x, m):
    return ((x + m - 1) // m) * m


def _silog_kernel(pred_ref, gt_ref, mask_ref, out_ref,
                  acc_d_ref, acc_d2_ref, acc_n_ref, *,
                  variance_focus, n_elems, total_rows, block_rows, chunk_rows):
    i = pl.program_id(0)

    @pl.when(i == 0)
    def _():
        acc_d_ref[...] = jnp.zeros_like(acc_d_ref)
        acc_d2_ref[...] = jnp.zeros_like(acc_d2_ref)
        acc_n_ref[...] = jnp.zeros_like(acc_n_ref)

    chunk_elems = chunk_rows * LANE
    num_chunks = block_rows // chunk_rows
    block_base = i * (block_rows * LANE)      # first flat element index of this block

    # Linear element index within a chunk (loop-invariant).  2-D iota: 1-D iota
    # is not supported by Mosaic.
    row = jax.lax.broadcasted_iota(jnp.int32, (chunk_rows, LANE), 0)
    col = jax.lax.broadcasted_iota(jnp.int32, (chunk_rows, LANE), 1)
    local_idx = row * LANE + col

    # Only chunks overlapping real rows need processing (last block is partial).
    rows_left = total_rows - i * block_rows
    chunks_here = jnp.minimum(num_chunks, pl.cdiv(rows_left, chunk_rows))

    def body(c, carry):
        s_d, s_d2, s_n = carry
        r0 = pl.multiple_of(c * chunk_rows, chunk_rows)
        p = pred_ref[pl.ds(r0, chunk_rows), :].astype(jnp.float32)
        g = gt_ref[pl.ds(r0, chunk_rows), :].astype(jnp.float32)
        mv = mask_ref[pl.ds(r0, chunk_rows), :]
        # Ragged-tail guard: elements at/after n_elems are DMA-unfilled garbage.
        rem = n_elems - block_base - c * chunk_elems
        valid = (mv != 0) & (local_idx < rem)
        # Select (not multiply) so log() of masked-out / garbage lanes is dropped.
        d = jnp.where(valid, jnp.log(p) - jnp.log(g), 0.0)
        s_d = s_d + jnp.sum(d.reshape(-1, 8, LANE), axis=0)
        s_d2 = s_d2 + jnp.sum((d * d).reshape(-1, 8, LANE), axis=0)
        s_n = s_n + jnp.sum(valid.astype(jnp.float32).reshape(-1, 8, LANE), axis=0)
        return s_d, s_d2, s_n

    zero = jnp.zeros((8, LANE), jnp.float32)
    s_d, s_d2, s_n = jax.lax.fori_loop(0, chunks_here, body, (zero, zero, zero))

    acc_d_ref[...] += s_d
    acc_d2_ref[...] += s_d2
    acc_n_ref[...] += s_n

    @pl.when(i == pl.num_programs(0) - 1)
    def _():
        n = jnp.sum(acc_n_ref[...])            # NaN (0/0) for an all-False mask,
        mean_d = jnp.sum(acc_d_ref[...]) / n   # matching the PyTorch reference.
        mean_d2 = jnp.sum(acc_d2_ref[...]) / n
        var = jnp.maximum(mean_d2 - variance_focus * mean_d * mean_d, 0.0)
        out_ref[0, 0] = jnp.sqrt(var) * 10.0


@functools.partial(jax.jit, static_argnums=(3,))
def _silog_loss_impl(depth_pred, depth_gt, mask, variance_focus):
    pred = depth_pred.reshape(-1)
    gt = depth_gt.reshape(-1)
    if pred.dtype not in (jnp.float32, jnp.bfloat16):
        pred = pred.astype(jnp.float32)
    if gt.dtype not in (jnp.float32, jnp.bfloat16):
        gt = gt.astype(jnp.float32)
    if mask.dtype in (jnp.int8, jnp.uint8):
        msk = mask.reshape(-1)                 # stream as-is (1 B/elem)
    else:
        msk = (mask.reshape(-1) != 0).astype(jnp.int8)

    n = pred.shape[0]
    rows = pl.cdiv(n, LANE)
    if rows * LANE != n:
        # TODO(synk): handle a non-128-divisible tail without this full copy.
        tail = rows * LANE - n
        pred = jnp.pad(pred, (0, tail), constant_values=1)
        gt = jnp.pad(gt, (0, tail), constant_values=1)
        msk = jnp.pad(msk, (0, tail))
    pred = pred.reshape(rows, LANE)
    gt = gt.reshape(rows, LANE)
    msk = msk.reshape(rows, LANE)

    block_rows = min(MAX_BLOCK_ROWS, _round_up(rows, CHUNK_ROWS))
    num_steps = pl.cdiv(rows, block_rows)      # last block may be partial

    kernel = functools.partial(
        _silog_kernel,
        variance_focus=float(variance_focus),
        n_elems=n,
        total_rows=rows,
        block_rows=block_rows,
        chunk_rows=CHUNK_ROWS,
    )

    cost = pl.CostEstimate(
        flops=10 * n,
        transcendentals=2 * n,
        bytes_accessed=n * (pred.dtype.itemsize + gt.dtype.itemsize + 1) + 4,
    )

    def tile():
        return pl.BlockSpec((block_rows, LANE), lambda i: (i, 0))

    out = pl.pallas_call(
        kernel,
        out_shape=jax.ShapeDtypeStruct((1, 1), jnp.float32),
        grid_spec=pltpu.PrefetchScalarGridSpec(
            num_scalar_prefetch=0,
            grid=(num_steps,),
            in_specs=[tile(), tile(), tile()],
            out_specs=pl.BlockSpec(memory_space=pltpu.SMEM),
            scratch_shapes=[
                pltpu.VMEM((8, LANE), jnp.float32),   # sum(d)   partials
                pltpu.VMEM((8, LANE), jnp.float32),   # sum(d^2) partials
                pltpu.VMEM((8, LANE), jnp.float32),   # valid-count partials
            ],
        ),
        compiler_params=pltpu.CompilerParams(
            dimension_semantics=("arbitrary",),
            vmem_limit_bytes=48 * 1024 * 1024,
        ),
        cost_estimate=cost,
    )(pred, gt, msk)

    return out[0, 0]


def silog_loss_pallas(depth_pred, depth_gt, mask, variance_focus):
    """Scalar float32 SILog loss matching the PyTorch module semantics.

    Note: an all-False mask yields NaN (mean of an empty selection), matching
    the PyTorch reference behavior.
    """
    return _silog_loss_impl(depth_pred, depth_gt, mask, float(variance_focus))


if __name__ == "__main__":
    key = jax.random.PRNGKey(0)
    k1, k2, k3 = jax.random.split(key, 3)

    B, C, H, W = 2, 4, 16, 16  # NCHW depth maps
    # Strictly positive depths so log() is valid on masked-in elements.
    depth_pred = jax.random.uniform(k1, (B, C, H, W), jnp.float32, 0.5, 10.0)
    depth_gt = jax.random.uniform(k2, (B, C, H, W), jnp.float32, 0.5, 10.0)
    mask = jax.random.uniform(k3, (B, C, H, W), jnp.float32) > 0.3  # bool mask

    variance_focus = 0.85

    def ref_loss(p, g, m, vf):
        mf = m.reshape(-1)
        d = jnp.where(mf, jnp.log(p.reshape(-1)) - jnp.log(g.reshape(-1)), 0.0)
        cnt = jnp.sum(mf.astype(jnp.float32))
        mean_d = jnp.sum(d) / cnt
        mean_d2 = jnp.sum(d * d) / cnt
        return jnp.sqrt(jnp.maximum(mean_d2 - vf * mean_d ** 2, 0.0)) * 10.0

    loss = silog_loss_pallas(depth_pred, depth_gt, mask, variance_focus)
    jax.block_until_ready(loss)
    ref = ref_loss(depth_pred, depth_gt, mask, variance_focus)
    assert jnp.allclose(loss, ref, rtol=1e-4, atol=1e-5), (loss, ref)

    # Ragged, non-128-divisible size exercises the tail-mask path.
    k4, k5, k6 = jax.random.split(jax.random.PRNGKey(1), 3)
    p2 = jax.random.uniform(k4, (3, 5, 10), jnp.float32, 0.5, 10.0)
    g2 = jax.random.uniform(k5, (3, 5, 10), jnp.float32, 0.5, 10.0)
    m2 = jax.random.uniform(k6, (3, 5, 10), jnp.float32) > 0.5
    loss2 = silog_loss_pallas(p2, g2, m2, variance_focus)
    jax.block_until_ready(loss2)
    ref2 = ref_loss(p2, g2, m2, variance_focus)
    assert jnp.allclose(loss2, ref2, rtol=1e-4, atol=1e-5), (loss2, ref2)

    print("KERNEL_OK")
</pallas_src>

<mosaic_0001>
module attributes {stable_mosaic.version = 11 : i64} {
  func.func @_silog_kernel(%arg0: i32, %arg1: memref<64x128xf32, #tpu.memory_space<vmem>>, %arg2: memref<64x128xf32, #tpu.memory_space<vmem>>, %arg3: memref<64x128xi8, #tpu.memory_space<vmem>>, %arg4: memref<1x1xf32, #tpu.memory_space<smem>>, %arg5: memref<8x128xf32, #tpu.memory_space<vmem>>, %arg6: memref<8x128xf32, #tpu.memory_space<vmem>>, %arg7: memref<8x128xf32, #tpu.memory_space<vmem>>) attributes {dimension_semantics = [#tpu.dimension_semantics<arbitrary>], iteration_bounds = array<i64: 1>, scalar_prefetch = 0 : i64, scratch_operands = 3 : i64, tpu.core_type = #tpu.core_type<tc>, window_params = [{transform_indices = @transform_0, window_bounds = array<i64: 64, 128>}, {transform_indices = @transform_1, window_bounds = array<i64: 64, 128>}, {transform_indices = @transform_2, window_bounds = array<i64: 64, 128>}, {transform_indices = @transform_3, window_bounds = array<i64: 1, 1>}]} {
    %c0_i32 = arith.constant 0 : i32
    %0 = arith.cmpi eq, %arg0, %c0_i32 : i32
    %1 = arith.extui %0 : i1 to i32
    %c0_i32_0 = arith.constant 0 : i32
    %2 = arith.cmpi ne, %1, %c0_i32_0 : i32
    scf.if %2 {
      %cst_17 = arith.constant 0.000000e+00 : f32
      %30 = vector.broadcast %cst_17 : f32 to vector<8x128xf32>
      %c0_18 = arith.constant 0 : index
      %c0_19 = arith.constant 0 : index
      %31 = vector.load %arg5[%c0_18, %c0_19] : memref<8x128xf32, #tpu.memory_space<vmem>>, vector<8x128xf32>
      tpu.vector_store %arg5[%c0_18, %c0_19], %30 {strides = array<i32>} : memref<8x128xf32, #tpu.memory_space<vmem>>, vector<8x128xf32>,
      %cst_20 = arith.constant 0.000000e+00 : f32
      %32 = vector.broadcast %cst_20 : f32 to vector<8x128xf32>
      %c0_21 = arith.constant 0 : index
      %c0_22 = arith.constant 0 : index
      %33 = vector.load %arg6[%c0_21, %c0_22] : memref<8x128xf32, #tpu.memory_space<vmem>>, vector<8x128xf32>
      tpu.vector_store %arg6[%c0_21, %c0_22], %32 {strides = array<i32>} : memref<8x128xf32, #tpu.memory_space<vmem>>, vector<8x128xf32>,
      %cst_23 = arith.constant 0.000000e+00 : f32
      %34 = vector.broadcast %cst_23 : f32 to vector<8x128xf32>
      %c0_24 = arith.constant 0 : index
      %c0_25 = arith.constant 0 : index
      %35 = vector.load %arg7[%c0_24, %c0_25] : memref<8x128xf32, #tpu.memory_space<vmem>>, vector<8x128xf32>
      tpu.vector_store %arg7[%c0_24, %c0_25], %34 {strides = array<i32>} : memref<8x128xf32, #tpu.memory_space<vmem>>, vector<8x128xf32>,
    } else {
    }
    %c8192_i32 = arith.constant 8192 : i32
    %3 = arith.muli %arg0, %c8192_i32 : i32
    %4 = tpu.iota {dimensions = array<i32: 0>} : vector<64x128xi32>
    %5 = tpu.iota {dimensions = array<i32: 1>} : vector<64x128xi32>
    %c128_i32 = arith.constant 128 : i32
    %6 = vector.broadcast %c128_i32 : i32 to vector<64x128xi32>
    %7 = arith.muli %4, %6 : vector<64x128xi32>
    %8 = arith.addi %7, %5 : vector<64x128xi32>
    %c64_i32 = arith.constant 64 : i32
    %9 = arith.muli %arg0, %c64_i32 : i32
    %c16_i32 = arith.constant 16 : i32
    %10 = arith.subi %c16_i32, %9 : i32
    %c63_i32 = arith.constant 63 : i32
    %11 = arith.addi %10, %c63_i32 : i32
    %c64_i32_1 = arith.constant 64 : i32
    %12 = arith.divsi %11, %c64_i32_1 : i32
    %c1_i32 = arith.constant 1 : i32
    %13 = arith.minsi %c1_i32, %12 : i32
    %cst = arith.constant 0.000000e+00 : f32
    %14 = vector.broadcast %cst : f32 to vector<8x128xf32>
    %c0_i32_2 = arith.constant 0 : i32
    %15 = arith.subi %13, %c0_i32_2 : i32
    %16 = arith.addi %c0_i32_2, %15 : i32
    %c1_i32_3 = arith.constant 1 : i32
    %17:3 = scf.for %arg8 = %c0_i32_2 to %16 step %c1_i32_3 iter_args(%arg9 = %14, %arg10 = %14, %arg11 = %14) -> (vector<8x128xf32>, vector<8x128xf32>, vector<8x128xf32>)  : i32 {
      %c64_i32_17 = arith.constant 64 : i32
      %30 = arith.muli %arg8, %c64_i32_17 : i32
      %31 = tpu.assume_multiple %30, 64 : i32
      %32 = arith.index_cast %31 : i32 to index
      %c0_18 = arith.constant 0 : index
      %33 = vector.load %arg1[%32, %c0_18] : memref<64x128xf32, #tpu.memory_space<vmem>>, vector<64x128xf32>
      %34 = arith.index_cast %31 : i32 to index
      %c0_19 = arith.constant 0 : index
      %35 = vector.load %arg2[%34, %c0_19] : memref<64x128xf32, #tpu.memory_space<vmem>>, vector<64x128xf32>
      %36 = arith.index_cast %31 : i32 to index
      %c0_20 = arith.constant 0 : index
      %37 = vector.load %arg3[%36, %c0_20] : memref<64x128xi8, #tpu.memory_space<vmem>>, vector<64x128xi8>
      %c2048_i32 = arith.constant 2048 : i32
      %38 = arith.subi %c2048_i32, %3 : i32
      %c8192_i32_21 = arith.constant 8192 : i32
      %39 = arith.muli %arg8, %c8192_i32_21 : i32
      %40 = arith.subi %38, %39 : i32
      %c0_i8 = arith.constant 0 : i8
      %41 = vector.broadcast %c0_i8 : i8 to vector<64x128xi8>
      %42 = arith.cmpi ne, %37, %41 : vector<64x128xi8>
      %43 = vector.broadcast %40 : i32 to vector<64x128xi32>
      %44 = arith.cmpi slt, %8, %43 : vector<64x128xi32>
      %45 = arith.andi %42, %44 : vector<64x128xi1>
      %46 = math.log %33 : vector<64x128xf32>
      %47 = math.log %35 : vector<64x128xf32>
      %48 = arith.subf %46, %47 : vector<64x128xf32>
      %cst_22 = arith.constant 0.000000e+00 : f32
      %49 = vector.broadcast %cst_22 : f32 to vector<64x128xf32>
      %50 = arith.select %45, %48, %49 : vector<64x128xi1>, vector<64x128xf32>
      %51 = vector.shape_cast %50 : vector<64x128xf32> to vector<8x8x128xf32>
      %cst_23 = arith.constant dense<0.000000e+00> : vector<8x128xf32>
      %52 = vector.multi_reduction <add>, %51, %cst_23 [0] : vector<8x8x128xf32> to vector<8x128xf32>
      %53 = arith.addf %arg9, %52 : vector<8x128xf32>
      %54 = arith.mulf %50, %50 : vector<64x128xf32>
      %55 = vector.shape_cast %54 : vector<64x128xf32> to vector<8x8x128xf32>
      %cst_24 = arith.constant dense<0.000000e+00> : vector<8x128xf32>
      %56 = vector.multi_reduction <add>, %55, %cst_24 [0] : vector<8x8x128xf32> to vector<8x128xf32>
      %57 = arith.addf %arg10, %56 : vector<8x128xf32>
      %58 = arith.extui %45 : vector<64x128xi1> to vector<64x128xi32>
      %59 = arith.sitofp %58 : vector<64x128xi32> to vector<64x128xf32>
      %60 = vector.shape_cast %59 : vector<64x128xf32> to vector<8x8x128xf32>
      %cst_25 = arith.constant dense<0.000000e+00> : vector<8x128xf32>
      %61 = vector.multi_reduction <add>, %60, %cst_25 [0] : vector<8x8x128xf32> to vector<8x128xf32>
      %62 = arith.addf %arg11, %61 : vector<8x128xf32>
      scf.yield %53, %57, %62 : vector<8x128xf32>, vector<8x128xf32>, vector<8x128xf32>
    }
    %c0 = arith.constant 0 : index
    %c0_4 = arith.constant 0 : index
    %18 = vector.load %arg5[%c0, %c0_4] : memref<8x128xf32, #tpu.memory_space<vmem>>, vector<8x128xf32>
    %19 = arith.addf %18, %17#0 : vector<8x128xf32>
    %c0_5 = arith.constant 0 : index
    %c0_6 = arith.constant 0 : index
    %20 = vector.load %arg5[%c0_5, %c0_6] : memref<8x128xf32, #tpu.memory_space<vmem>>, vector<8x128xf32>
    tpu.vector_store %arg5[%c0_5, %c0_6], %19 {strides = array<i32>} : memref<8x128xf32, #tpu.memory_space<vmem>>, vector<8x128xf32>,
    %c0_7 = arith.constant 0 : index
    %c0_8 = arith.constant 0 : index
    %21 = vector.load %arg6[%c0_7, %c0_8] : memref<8x128xf32, #tpu.memory_space<vmem>>, vector<8x128xf32>
    %22 = arith.addf %21, %17#1 : vector<8x128xf32>
    %c0_9 = arith.constant 0 : index
    %c0_10 = arith.constant 0 : index
    %23 = vector.load %arg6[%c0_9, %c0_10] : memref<8x128xf32, #tpu.memory_space<vmem>>, vector<8x128xf32>
    tpu.vector_store %arg6[%c0_9, %c0_10], %22 {strides = array<i32>} : memref<8x128xf32, #tpu.memory_space<vmem>>, vector<8x128xf32>,
    %c0_11 = arith.constant 0 : index
    %c0_12 = arith.constant 0 : index
    %24 = vector.load %arg7[%c0_11, %c0_12] : memref<8x128xf32, #tpu.memory_space<vmem>>, vector<8x128xf32>
    %25 = arith.addf %24, %17#2 : vector<8x128xf32>
    %c0_13 = arith.constant 0 : index
    %c0_14 = arith.constant 0 : index
    %26 = vector.load %arg7[%c0_13, %c0_14] : memref<8x128xf32, #tpu.memory_space<vmem>>, vector<8x128xf32>
    tpu.vector_store %arg7[%c0_13, %c0_14], %25 {strides = array<i32>} : memref<8x128xf32, #tpu.memory_space<vmem>>, vector<8x128xf32>,
    %c0_i32_15 = arith.constant 0 : i32
    %27 = arith.cmpi eq, %arg0, %c0_i32_15 : i32
    %28 = arith.extui %27 : i1 to i32
    %c0_i32_16 = arith.constant 0 : i32
    %29 = arith.cmpi ne, %28, %c0_i32_16 : i32
    scf.if %29 {
      %c0_17 = arith.constant 0 : index
      %c0_18 = arith.constant 0 : index
      %30 = vector.load %arg7[%c0_17, %c0_18] : memref<8x128xf32, #tpu.memory_space<vmem>>, vector<8x128xf32>
      %31 = vector.shape_cast %30 : vector<8x128xf32> to vector<1x8x128xf32>
      %cst_19 = arith.constant dense<0.000000e+00> : vector<1xf32>
      %32 = vector.multi_reduction <add>, %31, %cst_19 [1, 2] : vector<1x8x128xf32> to vector<1xf32>
      %33 = vector.shape_cast %32 : vector<1xf32> to vector<1x1x1xf32>
      %34 = vector.extract %33[0, 0, 0] : f32 from vector<1x1x1xf32>
      %c0_20 = arith.constant 0 : index
      %c0_21 = arith.constant 0 : index
      %35 = vector.load %arg5[%c0_20, %c0_21] : memref<8x128xf32, #tpu.memory_space<vmem>>, vector<8x128xf32>
      %36 = vector.shape_cast %35 : vector<8x128xf32> to vector<1x8x128xf32>
      %cst_22 = arith.constant dense<0.000000e+00> : vector<1xf32>
      %37 = vector.multi_reduction <add>, %36, %cst_22 [1, 2] : vector<1x8x128xf32> to vector<1xf32>
      %38 = vector.shape_cast %37 : vector<1xf32> to vector<1x1x1xf32>
      %39 = vector.extract %38[0, 0, 0] : f32 from vector<1x1x1xf32>
      %40 = arith.divf %39, %34 : f32
      %c0_23 = arith.constant 0 : index
      %c0_24 = arith.constant 0 : index
      %41 = vector.load %arg6[%c0_23, %c0_24] : memref<8x128xf32, #tpu.memory_space<vmem>>, vector<8x128xf32>
      %42 = vector.shape_cast %41 : vector<8x128xf32> to vector<1x8x128xf32>
      %cst_25 = arith.constant dense<0.000000e+00> : vector<1xf32>
      %43 = vector.multi_reduction <add>, %42, %cst_25 [1, 2] : vector<1x8x128xf32> to vector<1xf32>
      %44 = vector.shape_cast %43 : vector<1xf32> to vector<1x1x1xf32>
      %45 = vector.extract %44[0, 0, 0] : f32 from vector<1x1x1xf32>
      %46 = arith.divf %45, %34 : f32
      %cst_26 = arith.constant 8.500000e-01 : f32
      %47 = arith.mulf %cst_26, %40 : f32
      %48 = arith.mulf %47, %40 : f32
      %49 = arith.subf %46, %48 : f32
      %cst_27 = arith.constant 0.000000e+00 : f32
      %50 = arith.maximumf %49, %cst_27 : f32
      %51 = math.sqrt %50 : f32
      %cst_28 = arith.constant 1.000000e+01 : f32
      %52 = arith.mulf %51, %cst_28 : f32
      %c0_29 = arith.constant 0 : index
      %c0_30 = arith.constant 0 : index
      %53 = memref.load %arg4[%c0_29, %c0_30] : memref<1x1xf32, #tpu.memory_space<smem>>
      memref.store %52, %arg4[%c0_29, %c0_30] : memref<1x1xf32, #tpu.memory_space<smem>>
    } else {
    }
    return
  }
  func.func @transform_0(%arg0: i32) -> (i32, i32) {
    %c0_i32 = arith.constant 0 : i32
    %c0_i32_0 = arith.constant 0 : i32
    return %arg0, %c0_i32 : i32, i32
  }
  func.func @transform_1(%arg0: i32) -> (i32, i32) {
    %c0_i32 = arith.constant 0 : i32
    %c0_i32_0 = arith.constant 0 : i32
    return %arg0, %c0_i32 : i32, i32
  }
  func.func @transform_2(%arg0: i32) -> (i32, i32) {
    %c0_i32 = arith.constant 0 : i32
    %c0_i32_0 = arith.constant 0 : i32
    return %arg0, %c0_i32 : i32, i32
  }
  func.func @transform_3(%arg0: i32) -> (i32, i32) {
    %c0_i32 = arith.constant 0 : i32
    %c0_i32_0 = arith.constant 0 : i32
    %c0_i32_1 = arith.constant 0 : i32
    return %c0_i32, %c0_i32_0 : i32, i32
  }
}

</mosaic_0001>

<llo_original>
// kernel: _silog_loss_impl.1
$region0: #{_silog_loss_impl.1}
  #allocation0 [shape = 'u32[]', space=smem, size = 0x4, offset = 0x4, fixed_abs, tag = 'smem constant byte address 0x4 - core index']
  #allocation1 [shape = 'u32[144,128]{1,0:T(1,128)}', space=vmem, size = 0x12000, scoped, tag = 'internal scratch']
  #allocation2 [shape = 'f32[8,128]{1,0:T(8,128)}', space=vmem, size = 0x1000, scoped, tag = 'scratch operand']
  #allocation3 [shape = 'f32[8,128]{1,0:T(8,128)}', space=vmem, size = 0x1000, scoped, tag = 'scratch operand']
  #allocation4 [shape = 'f32[8,128]{1,0:T(8,128)}', space=vmem, size = 0x1000, scoped, tag = 'scratch operand']
  %s0 = inlined_call_operand.vmem [shape: f32[16,128], index: 0, kind: input, shape index: {}]
  %s1 = inlined_call_operand.vmem [shape: f32[16,128], index: 1, kind: input, shape index: {}]
  %s2 = inlined_call_operand.vmem [shape: s8[16,128], index: 2, kind: input, shape index: {}]
  %s3 = inlined_call_operand.hbm [shape: f32[1,1], index: 3, kind: output, shape index: {}]
  %s4 = sld [smem:[#allocation0]]
  $region37: #{_silog_loss_impl.1} parent=0
    _
  %s6 = ssub.s32 1, %s4
  %s7 = scalar_select 0, %s6, %s4
  $region1: #{_silog_loss_impl.1} parent=0
    #allocation5 [shape = 'u8[512]{0}', space=smem, size = 0x200, scoped, tag = 'output window, operand 0, single buffered']
    #allocation6 [shape = 's32[1]{0}', space=sflag, size = 0x4, scoped, tag = 'scoped memory for _silog_loss_impl.1']
    %8 = vsyncpa [#allocation6], 0
    // Predicated region
    $region2: #{_silog_loss_impl.1} parent=1 // pred_check
      _
    $region3: #{_silog_loss_impl.1} parent=1 // pred_check_branch
      %10 = sbr.rel (0) target = $region5
    $region4: #{_silog_loss_impl.1} parent=1 // pred_region
      _
    $region5: #{_silog_loss_impl.1} parent=1 // pred_fallthru
      _
    // Predicated region
    $region6: #{_silog_loss_impl.1} parent=1 // pred_check
      _
    $region7: #{_silog_loss_impl.1} parent=1 // pred_check_branch
      %12 = sbr.rel (0) target = $region9
    $region8: #{_silog_loss_impl.1} parent=1 // pred_region
      _
    $region9: #{_silog_loss_impl.1} parent=1 // pred_fallthru
      _
    // Predicated region
    $region10: #{_silog_loss_impl.1} parent=1 // pred_check
      _
    $region11: #{_silog_loss_impl.1} parent=1 // pred_check_branch
      %14 = sbr.rel (0) target = $region13
    $region12: #{_silog_loss_impl.1} parent=1 // pred_region
      _
    $region13: #{_silog_loss_impl.1} parent=1 // pred_fallthru
      _
    %p17 = scmp.eq.s32.totalorder 0, 0
    // Predicated region
    $region14: #{_silog_loss_impl.1} parent=1 // pred_check
      %p18 = pneg %p17
    $region15: #{_silog_loss_impl.1} parent=1 // pred_check_branch
      %20 = sbr.rel (%p18) target = $region17
    $region16: #{_silog_loss_impl.1} parent=1 // pred_region
      %21 = vst [vmem:[#allocation2] sm:$0xff] 0.0
      %22 = vst [vmem:[#allocation3] sm:$0xff] 0.0
      %23 = vst [vmem:[#allocation4] sm:$0xff] 0.0
    $region17: #{_silog_loss_impl.1} parent=1 // pred_fallthru
      _
    %s24 = smul.u32 0, 8192
    %v25 = vlaneseq
    %v26 = vshrl.u32 %v25, 7
    %v27 = vadd.s32 %v26, 8
    %v28 = vadd.s32 %v26, 16
    %v29 = vadd.s32 %v26, 24
    %v30 = vadd.s32 %v26, 32
    %v31 = vadd.s32 %v26, 40
    %v32 = vadd.s32 %v26, 48
    %v33 = vadd.s32 %v26, 56
    %v34 = vlaneseq
    %v35 = vand.u32 %v34, 127
    %v36 = vmul.u32 %v26, 128
    %v37 = vmul.u32 %v27, 128
    %v38 = vmul.u32 %v28, 128
    %v39 = vmul.u32 %v29, 128
    %v40 = vmul.u32 %v30, 128
    %v41 = vmul.u32 %v31, 128
    %v42 = vmul.u32 %v32, 128
    %v43 = vmul.u32 %v33, 128
    %v44 = vadd.s32 %v36, %v35
    %v45 = vadd.s32 %v37, %v35
    %v46 = vadd.s32 %v38, %v35
    %v47 = vadd.s32 %v39, %v35
    %v48 = vadd.s32 %v40, %v35
    %v49 = vadd.s32 %v41, %v35
    %v50 = vadd.s32 %v42, %v35
    %v51 = vadd.s32 %v43, %v35
    %s52 = smul.u32 0, 64
    %s53 = ssub.s32 79, %s52
    %p54 = scmp.lt.s32.totalorder %s53, 0
    %s55 = ssub.s32 0, %s53
    %s56 = scalar_select %p54, %s55, %s53
    %s57 = sshrl.u32 %s56, 6
    %s58 = ssub.s32 0, %s57
    %s59 = scalar_select %p54, %s58, %s57
    %p60 = scmp.lt.s32.totalorder %s59, 1
    %s61 = scalar_select %p60, %s59, 1
    // While loop
    $region18: #{_silog_loss_impl.1} parent=1 // loop_pre_header
      _
    $region19: #{_silog_loss_impl.1} parent=1 // loop_header
      %s63 = sphi 0, %s65
      %p64 = scmp.ge.s32.totalorder %s63, %s61
      %v68 = vphi 0.0, %v225
      %v69 = vphi 0.0, %v241
      %v70 = vphi 0.0, %v265
    $region20: #{_silog_loss_impl.1} parent=1 // loop_header_branch
      %67 = sbr.rel (%p64) target = $region24
    $region21: #{_silog_loss_impl.1} parent=1 // loop_body
      %s71 = smul.u32 %s63, 64
      %s72 = scalar_lea.vmem %s0, %s71
      %v73 = vld [vmem:[%s72] sm:$0xff]
      %v74 = vld [vmem:[%s72 + $0x8] sm:$0xff]
      %v75 = vld [vmem:[%s72 + $0x10] sm:$0xff]
      %v76 = vld [vmem:[%s72 + $0x18] sm:$0xff]
      %v77 = vld [vmem:[%s72 + $0x20] sm:$0xff]
      %v78 = vld [vmem:[%s72 + $0x28] sm:$0xff]
      %v79 = vld [vmem:[%s72 + $0x30] sm:$0xff]
      %v80 = vld [vmem:[%s72 + $0x38] sm:$0xff]
      %s81 = scalar_lea.vmem %s1, %s71
      %v82 = vld [vmem:[%s81] sm:$0xff]
      %v83 = vld [vmem:[%s81 + $0x8] sm:$0xff]
      %v84 = vld [vmem:[%s81 + $0x10] sm:$0xff]
      %v85 = vld [vmem:[%s81 + $0x18] sm:$0xff]
      %v86 = vld [vmem:[%s81 + $0x20] sm:$0xff]
      %v87 = vld [vmem:[%s81 + $0x28] sm:$0xff]
      %v88 = vld [vmem:[%s81 + $0x30] sm:$0xff]
      %v89 = vld [vmem:[%s81 + $0x38] sm:$0xff]
      %s90 = sshra.s32 %s71, 3
      %s91 = sand.u32 %s71, 7
      %s92 = smul.addr %s90, 2
      %s93 = scalar_lea.vmem %s2, %s92
      %v94 = vld [vmem:[%s93] sm:$0x3]
      %v95 = vld [vmem:[%s93 + $0x2] sm:$0x3]
      %v96 = vld [vmem:[%s93 + $0x4] sm:$0x3]
      %v97 = vld [vmem:[%s93 + $0x6] sm:$0x3]
      %v98 = vld [vmem:[%s93 + $0x8] sm:$0x3]
      %v99 = vld [vmem:[%s93 + $0xa] sm:$0x3]
      %v100 = vld [vmem:[%s93 + $0xc] sm:$0x3]
      %v101 = vld [vmem:[%s93 + $0xe] sm:$0x3]
      %s102 = ssub.s32 2048, %s24
      %s103 = smul.u32 %s63, 8192
      %s104 = ssub.s32 %s102, %s103
      %vm105 = vnez %v94
      %vm106 = vnez %v95
      %vm107 = vnez %v96
      %vm108 = vnez %v97
      %vm109 = vnez %v98
      %vm110 = vnez %v99
      %vm111 = vnez %v100
      %vm112 = vnez %v101
      %v113 = vstv %s104
      %vm114 = vcmp.lt.s32.totalorder %v44, %v113
      %vm115 = vcmp.lt.s32.totalorder %v45, %v113
      %vm116 = vcmp.lt.s32.totalorder %v46, %v113
      %vm117 = vcmp.lt.s32.totalorder %v47, %v113
      %vm118 = vcmp.lt.s32.totalorder %v48, %v113
      %vm119 = vcmp.lt.s32.totalorder %v49, %v113
      %vm120 = vcmp.lt.s32.totalorder %v50, %v113
      %vm121 = vcmp.lt.s32.totalorder %v51, %v113
      %vm122 = vmpackc.low %vm114, %vm114
      %vm123 = vmpackc.even %vm122, %vm122
      %vm124 = vmpackc.low %vm115, %vm115
      %vm125 = vmpackc.even %vm124, %vm124
      %vm126 = vmpackc.low %vm116, %vm116
      %vm127 = vmpackc.even %vm126, %vm126
      %vm128 = vmpackc.low %vm117, %vm117
      %vm129 = vmpackc.even %vm128, %vm128
      %vm130 = vmpackc.low %vm118, %vm118
      %vm131 = vmpackc.even %vm130, %vm130
      %vm132 = vmpackc.low %vm119, %vm119
      %vm133 = vmpackc.even %vm132, %vm132
      %vm134 = vmpackc.low %vm120, %vm120
      %vm135 = vmpackc.even %vm134, %vm134
      %vm136 = vmpackc.low %vm121, %vm121
      %vm137 = vmpackc.even %vm136, %vm136
      %vm138 = vmand %vm105, %vm123
      %vm139 = vmand %vm106, %vm125
      %vm140 = vmand %vm107, %vm127
      %vm141 = vmand %vm108, %vm129
      %vm142 = vmand %vm109, %vm131
      %vm143 = vmand %vm110, %vm133
      %vm144 = vmand %vm111, %vm135
      %vm145 = vmand %vm112, %vm137
      %v146 = vlog2.pop %v73
      %v147 = vmul.f32 %v146, 0.6931472
      %v148 = vlog2.pop %v74
      %v149 = vmul.f32 %v148, 0.6931472
      %v150 = vlog2.pop %v75
      %v151 = vmul.f32 %v150, 0.6931472
      %v152 = vlog2.pop %v76
      %v153 = vmul.f32 %v152, 0.6931472
      %v154 = vlog2.pop %v77
      %v155 = vmul.f32 %v154, 0.6931472
      %v156 = vlog2.pop %v78
      %v157 = vmul.f32 %v156, 0.6931472
      %v158 = vlog2.pop %v79
      %v159 = vmul.f32 %v158, 0.6931472
      %v160 = vlog2.pop %v80
      %v161 = vmul.f32 %v160, 0.6931472
      %v162 = vlog2.pop %v82
      %v163 = vmul.f32 %v162, 0.6931472
      %v164 = vlog2.pop %v83
      %v165 = vmul.f32 %v164, 0.6931472
      %v166 = vlog2.pop %v84
      %v167 = vmul.f32 %v166, 0.6931472
      %v168 = vlog2.pop %v85
      %v169 = vmul.f32 %v168, 0.6931472
      %v170 = vlog2.pop %v86
      %v171 = vmul.f32 %v170, 0.6931472
      %v172 = vlog2.pop %v87
      %v173 = vmul.f32 %v172, 0.6931472
      %v174 = vlog2.pop %v88
      %v175 = vmul.f32 %v174, 0.6931472
      %v176 = vlog2.pop %v89
      %v177 = vmul.f32 %v176, 0.6931472
      %v178 = vsub.f32 %v147, %v163
      %v179 = vsub.f32 %v149, %v165
      %v180 = vsub.f32 %v151, %v167
      %v181 = vsub.f32 %v153, %v169
      %v182 = vsub.f32 %v155, %v171
      %v183 = vsub.f32 %v157, %v173
      %v184 = vsub.f32 %v159, %v175
      %v185 = vsub.f32 %v161, %v177
      %v186 = vsel %vm138, 16843009, 0
      %v187 = vsel %vm139, 16843009, 0
      %v188 = vsel %vm140, 16843009, 0
      %v189 = vsel %vm141, 16843009, 0
      %v190 = vsel %vm142, 16843009, 0
      %v191 = vsel %vm143, 16843009, 0
      %v192 = vsel %vm144, 16843009, 0
      %v193 = vsel %vm145, 16843009, 0
      %v194 = vunpack.c.0.s8 %v186
      %v195 = vunpack.c.0.s8 %v187
      %v196 = vunpack.c.0.s8 %v188
      %v197 = vunpack.c.0.s8 %v189
      %v198 = vunpack.c.0.s8 %v190
      %v199 = vunpack.c.0.s8 %v191
      %v200 = vunpack.c.0.s8 %v192
      %v201 = vunpack.c.0.s8 %v193
      %vm202 = vcmp.ne.s32.totalorder %v194, 0
      %vm203 = vcmp.ne.s32.totalorder %v195, 0
      %vm204 = vcmp.ne.s32.totalorder %v196, 0
      %vm205 = vcmp.ne.s32.totalorder %v197, 0
      %vm206 = vcmp.ne.s32.totalorder %v198, 0
      %vm207 = vcmp.ne.s32.totalorder %v199, 0
      %vm208 = vcmp.ne.s32.totalorder %v200, 0
      %vm209 = vcmp.ne.s32.totalorder %v201, 0
      %v210 = vsel %vm202, %v178, 0.0
      %v211 = vsel %vm203, %v179, 0.0
      %v212 = vsel %vm204, %v180, 0.0
      %v213 = vsel %vm205, %v181, 0.0
      %v214 = vsel %vm206, %v182, 0.0
      %v215 = vsel %vm207, %v183, 0.0
      %v216 = vsel %vm208, %v184, 0.0
      %v217 = vsel %vm209, %v185, 0.0
      %v218 = vadd.f32 %v210, %v211
      %v219 = vadd.f32 %v218, %v212
      %v220 = vadd.f32 %v219, %v213
      %v221 = vadd.f32 %v220, %v214
      %v222 = vadd.f32 %v221, %v215
      %v223 = vadd.f32 %v222, %v216
      %v224 = vadd.f32 %v223, %v217
      %v225 = vadd.f32 %v68, %v224
      %v226 = vmul.f32 %v210, %v210
      %v227 = vmul.f32 %v211, %v211
      %v228 = vmul.f32 %v212, %v212
      %v229 = vmul.f32 %v213, %v213
      %v230 = vmul.f32 %v214, %v214
      %v231 = vmul.f32 %v215, %v215
      %v232 = vmul.f32 %v216, %v216
      %v233 = vmul.f32 %v217, %v217
      %v234 = vadd.f32 %v226, %v227
      %v235 = vadd.f32 %v234, %v228
      %v236 = vadd.f32 %v235, %v229
      %v237 = vadd.f32 %v236, %v230
      %v238 = vadd.f32 %v237, %v231
      %v239 = vadd.f32 %v238, %v232
      %v240 = vadd.f32 %v239, %v233
      %v241 = vadd.f32 %v69, %v240
      %v242 = vsel %vm202, 1, 0
      %v243 = vsel %vm203, 1, 0
      %v244 = vsel %vm204, 1, 0
      %v245 = vsel %vm205, 1, 0
      %v246 = vsel %vm206, 1, 0
      %v247 = vsel %vm207, 1, 0
      %v248 = vsel %vm208, 1, 0
      %v249 = vsel %vm209, 1, 0
      %v250 = vcvt.s32.f32 %v242
      %v251 = vcvt.s32.f32 %v243
      %v252 = vcvt.s32.f32 %v244
      %v253 = vcvt.s32.f32 %v245
      %v254 = vcvt.s32.f32 %v246
      %v255 = vcvt.s32.f32 %v247
      %v256 = vcvt.s32.f32 %v248
      %v257 = vcvt.s32.f32 %v249
      %v258 = vadd.f32 %v250, %v251
      %v259 = vadd.f32 %v258, %v252
      %v260 = vadd.f32 %v259, %v253
      %v261 = vadd.f32 %v260, %v254
      %v262 = vadd.f32 %v261, %v255
      %v263 = vadd.f32 %v262, %v256
      %v264 = vadd.f32 %v263, %v257
      %v265 = vadd.f32 %v70, %v264
    $region22: #{_silog_loss_impl.1} parent=1 // loop_footer
      %s65 = sadd.s32 %s63, 1
    $region23: #{_silog_loss_impl.1} parent=1 // loop_footer_branch
      %62 = sbr.rel target = $region19
    $region24: #{_silog_loss_impl.1} parent=1 // loop_exit
      _
    %v266 = vld [vmem:[#allocation2] sm:$0xff]
    %v267 = vadd.f32 %v266, %v68
    %268 = vst [vmem:[#allocation2] sm:$0xff] %v267
    %v269 = vld [vmem:[#allocation3] sm:$0xff]
    %v270 = vadd.f32 %v269, %v69
    %271 = vst [vmem:[#allocation3] sm:$0xff] %v270
    %v272 = vld [vmem:[#allocation4] sm:$0xff]
    %v273 = vadd.f32 %v272, %v70
    %274 = vst [vmem:[#allocation4] sm:$0xff] %v273
    // Predicated region
    $region25: #{_silog_loss_impl.1} parent=1 // pred_check
      %p275 = pneg %p17
    $region26: #{_silog_loss_impl.1} parent=1 // pred_check_branch
      %277 = sbr.rel (%p275) target = $region28
    $region27: #{_silog_loss_impl.1} parent=1 // pred_region
      %v278 = vld [vmem:[#allocation4] sm:$0xff]
      %279 = vadd.xlane.f32.xlu0 %v278
      %v280 = vpop.xlane.xlu0 %279
      %v281 = vrot.slane %v280, 4
      %v282 = vadd.f32 %v280, %v281
      %v283 = vrot.slane %v282, 2
      %v284 = vadd.f32 %v282, %v283
      %v285 = vrot.slane %v284, 1
      %v286 = vadd.f32 %v284, %v285
      %s287 = vtos %v286
      %v288 = vld [vmem:[#allocation2] sm:$0xff]
      %289 = vadd.xlane.f32.xlu0 %v288
      %v290 = vpop.xlane.xlu0 %289
      %v291 = vrot.slane %v290, 4
      %v292 = vadd.f32 %v290, %v291
      %v293 = vrot.slane %v292, 2
      %v294 = vadd.f32 %v292, %v293
      %v295 = vrot.slane %v294, 1
      %v296 = vadd.f32 %v294, %v295
      %s297 = vtos %v296
      %v298 = vstv %s287
      %v299 = vrcp.pop %v298
      %s300 = vtos %v299
      %s301 = smul.f32 %s297, %s300
      %v302 = vld [vmem:[#allocation3] sm:$0xff]
      %303 = vadd.xlane.f32.xlu0 %v302
      %v304 = vpop.xlane.xlu0 %303
      %v305 = vrot.slane %v304, 4
      %v306 = vadd.f32 %v304, %v305
      %v307 = vrot.slane %v306, 2
      %v308 = vadd.f32 %v306, %v307
      %v309 = vrot.slane %v308, 1
      %v310 = vadd.f32 %v308, %v309
      %s311 = vtos %v310
      %v312 = vstv %s287
      %v313 = vrcp.pop %v312
      %s314 = vtos %v313
      %s315 = smul.f32 %s311, %s314
      %s316 = smul.f32 %s301, 0.85
      %s317 = smul.f32 %s316, %s301
      %s318 = ssub.f32 %s315, %s317
      %s319 = smax.f32 %s318, 0.0
      %v320 = vstv %s319
      %v321 = vrsqrt.pop %v320
      %v322 = vmul.f32 %v320, %v321
      %vm323 = vcmp.eq.f32.partialorder %v320, inf
      %v324 = vsel %vm323, %v320, %v322
      %vm325 = vcmp.eq.f32.partialorder %v320, 0.0
      %v326 = vand.u32 %v320, 2147483648
      %v327 = vsel %vm325, %v326, %v324
      %s328 = vtos %v327
      %s329 = smul.f32 %s328, 10.0
      %s330 = scalar_lea.smem [#allocation5], 0
      %331 = sst [smem:[%s330]] %s329
    $region28: #{_silog_loss_impl.1} parent=1 // pred_fallthru
      _
    // Predicated region
    $region29: #{_silog_loss_impl.1} parent=1 // pred_check
      _
    $region30: #{_silog_loss_impl.1} parent=1 // pred_check_branch
      %333 = sbr.rel (0) target = $region32
    $region31: #{_silog_loss_impl.1} parent=1 // pred_region
      %s335 = ssub.s32 16, 16
      %336 = vsyncadd [#allocation6], %s335
      %339 = dma.smem_to_hbm [#allocation5], 16, %s3, [#allocation6]
    $region32: #{_silog_loss_impl.1} parent=1 // pred_fallthru
      _
    // Predicated region
    $region33: #{_silog_loss_impl.1} parent=1 // pred_check
      _
    $region34: #{_silog_loss_impl.1} parent=1 // pred_check_branch
      %341 = sbr.rel (0) target = $region36
    $region35: #{_silog_loss_impl.1} parent=1 // pred_region
      %342 = dma.done [#allocation6], 16
    $region36: #{_silog_loss_impl.1} parent=1 // pred_fallthru
      _
    %343 = sfence
    %344 = vsyncpa [#allocation6], 1

</llo_original>
